<compile_context>
chip_gen: v5e
topology: v5e:2x2
jax: 0.10.0
libtpu: 0.0.40
codegen_flags: <defaults>
</compile_context>

<pallas_src>
import jax
import jax.numpy as jnp
from jax.experimental import pallas as pl
from jax.experimental.pallas import tpu as pltpu


def _round_up(x, m):
    return ((x + m - 1) // m) * m


def _cdiv(a, b):
    return (a + b - 1) // b


def _vmem_capacity_bytes():
    try:
        return int(pltpu.get_tpu_info().vmem_capacity_bytes)
    except Exception:
        return 64 * 1024 * 1024  # conservative default (v7x per-TC VMEM)


def _choose_tiles(B, F, itemsize):
    """Pick (tb, fk, vmem_limit) from the chip's physical VMEM capacity."""
    vmem_cap = _vmem_capacity_bytes()              # 128 MiB v5e/v6e, 64 MiB v7x
    vmem_limit = min(int(vmem_cap * 0.85), 110 * 1024 * 1024)
    budget = int(vmem_cap * 0.60)                  # bytes for kernel buffers

    # Feature tile: keep full F unless even a modest batch tile would blow the
    # budget; then split F on a 128-lane-aligned chunk (reduction axis k).
    MIN_ROWS = 512
    if 2 * MIN_ROWS * F * itemsize <= budget:
        fk = F
    else:
        fk = max(128, (budget // (2 * MIN_ROWS * itemsize)) // 128 * 128)

    # Per-batch-row VMEM cost:
    #   2 double-buffered x tiles (fk*itemsize each)
    # + 2 double-buffered (tb,1) f32 output blocks + 1 (tb,1) f32 accumulator,
    #   each lane-padded to 128 lanes -> 512 B per row.
    w_bytes = 2 * _round_up(fk, 8) * 128 * itemsize  # (fk,1) weight, lane-padded
    per_row = 2 * fk * itemsize + 3 * 512
    tb = max(8, (max(budget - w_bytes, per_row * 8) // per_row) // 8 * 8)
    tb = min(tb, _round_up(B, 8))                  # don't over-allocate tiny batches
    return tb, fk, vmem_limit


def _make_logreg_kernel(F, fk):
    needs_mask = (F % fk) != 0                     # only when the K axis is ragged

    def kernel(x_ref, w_ref, b_ref, o_ref, acc_ref):
        # x_ref: (tb, fk) VMEM, w_ref: (fk, 1) VMEM, b_ref: (1,) f32 SMEM,
        # o_ref: (tb, 1) f32 VMEM, acc_ref: (tb, 1) f32 VMEM scratch.
        k = pl.program_id(1)

        @pl.when(k == 0)
        def _init():
            acc_ref[...] = jnp.zeros_like(acc_ref)

        x = x_ref[...]
        if needs_mask:
            # Zero out-of-range feature columns of the (ragged) last K block so
            # unspecified padded values never contribute to valid rows.
            col = jax.lax.broadcasted_iota(jnp.int32, x.shape, 1) + k * fk
            x = jnp.where(col < F, x, jnp.zeros_like(x))

        # Canonical MXU matmul: contraction on x's minor axis -> no x transpose.
        acc_ref[...] += jnp.dot(x, w_ref[...], preferred_element_type=jnp.float32)

        @pl.when(k == pl.num_programs(1) - 1)
        def _finalize():
            z = acc_ref[...] + b_ref[0]
            o_ref[...] = jax.nn.sigmoid(z).astype(o_ref.dtype)

    return kernel


@jax.jit
def logistic_regression_forward(x, weight, bias):
    """x: [B, F] (f32/bf16), weight: [1, F] (PyTorch nn.Linear layout), bias: [1]."""
    B, F = x.shape
    itemsize = jnp.dtype(x.dtype).itemsize

    tb, fk, vmem_limit = _choose_tiles(B, F, itemsize)
    n_i = _cdiv(B, tb)
    n_k = _cdiv(F, fk)

    # Tiny weight column (F elements): reshape once, zero-pad to a K-tile
    # multiple so the last weight block never reads garbage.  x itself is
    # never padded or copied in HBM.
    w_col = weight.reshape(F, 1).astype(x.dtype)
    Fp = n_k * fk
    if Fp != F:
        w_col = jnp.pad(w_col, ((0, Fp - F), (0, 0)))
    b = bias.reshape(1).astype(jnp.float32)

    kernel = _make_logreg_kernel(F, fk)

    out = pl.pallas_call(
        kernel,
        out_shape=jax.ShapeDtypeStruct((B, 1), jnp.float32),
        grid_spec=pltpu.PrefetchScalarGridSpec(
            num_scalar_prefetch=0,
            grid=(n_i, n_k),
            in_specs=[
                pl.BlockSpec((tb, fk), lambda i, k: (i, k)),           # x tile
                # Weight block index depends only on k; when n_k == 1 it is
                # constant, so Pallas keeps it resident (no per-step re-DMA).
                pl.BlockSpec((fk, 1), lambda i, k: (k, 0)),            # weight col
                pl.BlockSpec(memory_space=pltpu.MemorySpace.SMEM),     # bias
            ],
            out_specs=pl.BlockSpec((tb, 1), lambda i, k: (i, 0)),
            scratch_shapes=[pltpu.VMEM((tb, 1), jnp.float32)],
        ),
        compiler_params=pltpu.CompilerParams(
            # Batch axis independent (megacore-shardable); K axis is a reduction.
            # On v7x, if a profile shows only one TensorCore active, switch the
            # batch axis to pltpu.CORE_PARALLEL.
            dimension_semantics=("parallel", "arbitrary"),
            vmem_limit_bytes=vmem_limit,
        ),
        cost_estimate=pl.CostEstimate(
            flops=2 * B * F,
            transcendentals=B,
            bytes_accessed=(B * F + F) * itemsize + B * 4,
        ),
    )(x, w_col, b)

    return out


if __name__ == "__main__":
    key = jax.random.PRNGKey(0)
    k_x, k_w, k_b = jax.random.split(key, 3)

    batch, n_features = 8, 32

    # Deterministic inputs / params (mimic nn.Linear's U(-1/sqrt(F), 1/sqrt(F)) init)
    x = jax.random.normal(k_x, (batch, n_features), dtype=jnp.float32)
    bound = 1.0 / jnp.sqrt(jnp.float32(n_features))
    weight = jax.random.uniform(k_w, (1, n_features), minval=-bound, maxval=bound,
                                dtype=jnp.float32)
    bias = jax.random.uniform(k_b, (1,), minval=-bound, maxval=bound,
                              dtype=jnp.float32)

    out = logistic_regression_forward(x, weight, bias)
    out = jax.block_until_ready(out)

    # Reference check (plain JAX)
    ref = jax.nn.sigmoid(x @ weight.T + bias)
    assert out.shape == (batch, 1)
    assert jnp.allclose(out, ref, atol=1e-5), "mismatch vs reference"

    # TODO(synk): train()/calculate_accuracy() (BCELoss, Adam loop) are host-side
    # training utilities, not part of the forward pass, and are not kernelized.

    print("KERNEL_OK")
</pallas_src>

<mosaic_0001>
module attributes {stable_mosaic.version = 11 : i64} {
  func.func @kernel(%arg0: i32, %arg1: i32, %arg2: memref<8x32xf32, #tpu.memory_space<vmem>>, %arg3: memref<32x1xf32, #tpu.memory_space<vmem>>, %arg4: memref<1xf32, #tpu.memory_space<smem>>, %arg5: memref<8x1xf32, #tpu.memory_space<vmem>>, %arg6: memref<8x1xf32, #tpu.memory_space<vmem>>) attributes {dimension_semantics = [#tpu.dimension_semantics<parallel>, #tpu.dimension_semantics<arbitrary>], iteration_bounds = array<i64: 1, 1>, scalar_prefetch = 0 : i64, scratch_operands = 1 : i64, tpu.core_type = #tpu.core_type<tc>, window_params = [{transform_indices = @transform_0, window_bounds = array<i64: 8, 32>}, {transform_indices = @transform_1, window_bounds = array<i64: 32, 1>}, {transform_indices = @transform_2, window_bounds = array<i64: 1>}, {transform_indices = @transform_3, window_bounds = array<i64: 8, 1>}]} {
    %c0_i32 = arith.constant 0 : i32
    %0 = arith.cmpi eq, %arg1, %c0_i32 : i32
    %1 = arith.extui %0 : i1 to i32
    %c0_i32_0 = arith.constant 0 : i32
    %2 = arith.cmpi ne, %1, %c0_i32_0 : i32
    scf.if %2 {
      %cst_10 = arith.constant 0.000000e+00 : f32
      %12 = vector.broadcast %cst_10 : f32 to vector<8x1xf32>
      %c0_11 = arith.constant 0 : index
      %c0_12 = arith.constant 0 : index
      %13 = vector.load %arg6[%c0_11, %c0_12] : memref<8x1xf32, #tpu.memory_space<vmem>>, vector<8x1xf32>
      tpu.vector_store %arg6[%c0_11, %c0_12], %12 {strides = array<i32>} : memref<8x1xf32, #tpu.memory_space<vmem>>, vector<8x1xf32>,
    } else {
    }
    %c0 = arith.constant 0 : index
    %c0_1 = arith.constant 0 : index
    %3 = vector.load %arg2[%c0, %c0_1] : memref<8x32xf32, #tpu.memory_space<vmem>>, vector<8x32xf32>
    %c0_2 = arith.constant 0 : index
    %c0_3 = arith.constant 0 : index
    %4 = vector.load %arg6[%c0_2, %c0_3] : memref<8x1xf32, #tpu.memory_space<vmem>>, vector<8x1xf32>
    %c0_4 = arith.constant 0 : index
    %c0_5 = arith.constant 0 : index
    %5 = vector.load %arg3[%c0_4, %c0_5] : memref<32x1xf32, #tpu.memory_space<vmem>>, vector<32x1xf32>
    %cst = arith.constant dense<0.000000e+00> : vector<8x1xf32>
    %6 = tpu.matmul %3, %5, %cst {dimension_numbers = #tpu.dot_dimension_numbers<[1], [0], [0], [1], [0, 0, 1, 1], [], []>} : vector<8x32xf32>, vector<32x1xf32>, vector<8x1xf32> -> vector<8x1xf32>
    %7 = arith.addf %4, %6 : vector<8x1xf32>
    %c0_6 = arith.constant 0 : index
    %c0_7 = arith.constant 0 : index
    %8 = vector.load %arg6[%c0_6, %c0_7] : memref<8x1xf32, #tpu.memory_space<vmem>>, vector<8x1xf32>
    tpu.vector_store %arg6[%c0_6, %c0_7], %7 {strides = array<i32>} : memref<8x1xf32, #tpu.memory_space<vmem>>, vector<8x1xf32>,
    %c0_i32_8 = arith.constant 0 : i32
    %9 = arith.cmpi eq, %arg1, %c0_i32_8 : i32
    %10 = arith.extui %9 : i1 to i32
    %c0_i32_9 = arith.constant 0 : i32
    %11 = arith.cmpi ne, %10, %c0_i32_9 : i32
    scf.if %11 {
      %c0_10 = arith.constant 0 : index
      %c0_11 = arith.constant 0 : index
      %12 = vector.load %arg6[%c0_10, %c0_11] : memref<8x1xf32, #tpu.memory_space<vmem>>, vector<8x1xf32>
      %c0_12 = arith.constant 0 : index
      %13 = memref.load %arg4[%c0_12] : memref<1xf32, #tpu.memory_space<smem>>
      %14 = vector.broadcast %13 : f32 to vector<8x1xf32>
      %15 = arith.addf %12, %14 : vector<8x1xf32>
      %16 = arith.negf %15 : vector<8x1xf32>
      %17 = math.exp %16 : vector<8x1xf32>
      %cst_13 = arith.constant 1.000000e+00 : f32
      %18 = vector.broadcast %cst_13 : f32 to vector<8x1xf32>
      %19 = arith.addf %18, %17 : vector<8x1xf32>
      %20 = arith.divf %18, %19 : vector<8x1xf32>
      %c0_14 = arith.constant 0 : index
      %c0_15 = arith.constant 0 : index
      %21 = vector.load %arg5[%c0_14, %c0_15] : memref<8x1xf32, #tpu.memory_space<vmem>>, vector<8x1xf32>
      tpu.vector_store %arg5[%c0_14, %c0_15], %20 {strides = array<i32>} : memref<8x1xf32, #tpu.memory_space<vmem>>, vector<8x1xf32>,
    } else {
    }
    return
  }
  func.func @transform_0(%arg0: i32, %arg1: i32) -> (i32, i32) {
    %c0_i32 = arith.constant 0 : i32
    return %arg0, %arg1 : i32, i32
  }
  func.func @transform_1(%arg0: i32, %arg1: i32) -> (i32, i32) {
    %c0_i32 = arith.constant 0 : i32
    %c0_i32_0 = arith.constant 0 : i32
    return %arg1, %c0_i32 : i32, i32
  }
  func.func @transform_2(%arg0: i32, %arg1: i32) -> i32 {
    %c0_i32 = arith.constant 0 : i32
    %c0_i32_0 = arith.constant 0 : i32
    return %c0_i32 : i32
  }
  func.func @transform_3(%arg0: i32, %arg1: i32) -> (i32, i32) {
    %c0_i32 = arith.constant 0 : i32
    %c0_i32_0 = arith.constant 0 : i32
    return %arg0, %c0_i32 : i32, i32
  }
}

</mosaic_0001>

<llo_original>
// kernel: logistic_regression_forward.1
$region0: #{logistic_regression_forward.1}
  #allocation0 [shape = 'u32[]', space=smem, size = 0x4, offset = 0x4, fixed_abs, tag = 'smem constant byte address 0x4 - core index']
  #allocation1 [shape = 'u32[72,128]{1,0:T(1,128)}', space=vmem, size = 0x9000, scoped, tag = 'internal scratch']
  #allocation2 [shape = 'f32[8,1]{1,0:T(8,128)}', space=vmem, size = 0x1000, scoped, tag = 'scratch operand']
  #allocation3 [shape = 'f32[1]{0:T(128)S(6)}', space=smem, size = 0x200, scoped, tag = 'scoped memory for logistic_regression_forward.1']
  %s0 = inlined_call_operand.vmem [shape: f32[8,32], index: 0, kind: input, shape index: {}]
  %s1 = inlined_call_operand.vmem [shape: f32[32,1], index: 1, kind: input, shape index: {}]
  %s2 = inlined_call_operand.<no memory space> [shape: f32[1], index: 2, kind: input, shape index: {}]
  %s3 = inlined_call_operand.vmem [shape: f32[8,1], index: 3, kind: output, shape index: {}]
  %s4 = sld [smem:[#allocation0]]
  $region30: #{logistic_regression_forward.1} parent=0
    _
  %s6 = ssub.s32 1, %s4
  %s7 = scalar_select 0, %s6, %s4
  %8 = sst [smem:[#allocation3]] %s2
  // Predicated region
  $region2: #{logistic_regression_forward.1} parent=0 // pred_check
    _
  $region3: #{logistic_regression_forward.1} parent=0 // pred_check_branch
    %10 = sbr.rel (0) target = $region5
  $region4: #{logistic_regression_forward.1} parent=0 // pred_region
    _
  $region5: #{logistic_regression_forward.1} parent=0 // pred_fallthru
    _
  // Predicated region
  $region6: #{logistic_regression_forward.1} parent=0 // pred_check
    _
  $region7: #{logistic_regression_forward.1} parent=0 // pred_check_branch
    %12 = sbr.rel (0) target = $region9
  $region8: #{logistic_regression_forward.1} parent=0 // pred_region
    _
  $region9: #{logistic_regression_forward.1} parent=0 // pred_fallthru
    _
  // Predicated region
  $region10: #{logistic_regression_forward.1} parent=0 // pred_check
    _
  $region11: #{logistic_regression_forward.1} parent=0 // pred_check_branch
    %14 = sbr.rel (0) target = $region13
  $region12: #{logistic_regression_forward.1} parent=0 // pred_region
    _
  $region13: #{logistic_regression_forward.1} parent=0 // pred_fallthru
    _
  %p15 = scmp.eq.s32.totalorder 0, 0
  // Predicated region
  $region14: #{logistic_regression_forward.1} parent=0 // pred_check
    %p16 = pneg %p15
  $region15: #{logistic_regression_forward.1} parent=0 // pred_check_branch
    %18 = sbr.rel (%p16) target = $region17
  $region16: #{logistic_regression_forward.1} parent=0 // pred_region
    %vm19 = vcmask 7168
    %20 = vst.msk [vmem:[#allocation2] sm:$0xff] %vm19, 0.0
  $region17: #{logistic_regression_forward.1} parent=0 // pred_fallthru
    _
  %v21 = vld [vmem:[%s0] sm:$0xff]
  %v22 = vld [vmem:[#allocation2] sm:$0xff]
  %v23 = vld [vmem:[%s1] sm:$0xff]
  %v24 = vld [vmem:[%s1 + $0x8] sm:$0xff]
  %v25 = vld [vmem:[%s1 + $0x10] sm:$0xff]
  %v26 = vld [vmem:[%s1 + $0x18] sm:$0xff]
  %vm27 = vcmask 261120
  %v29 = vsel %vm27, %v21, 0
  %31 = vmatpush.msra.mxu0 0.0
  %32 = vmatpush.msra.mxu0 0.0
  %33 = vmatpush.msra.mxu0 0.0
  %34 = vmatpush.msra.mxu0 0.0
  %35 = vmatpush.msra.mxu0 0.0
  %36 = vmatpush.msra.mxu0 0.0
  %37 = vmatpush.msra.mxu0 0.0
  %38 = vmatpush.msra.mxu0 0.0
  %39 = vmatpush.msra.mxu0 0.0
  %40 = vmatpush.msra.mxu0 0.0
  %41 = vmatpush.msra.mxu0 0.0
  %42 = vmatpush.msra.mxu0 0.0
  %43 = vmatpush.msra.mxu0 %v26
  %44 = vmatpush.msra.mxu0 %v25
  %45 = vmatpush.msra.mxu0 %v24
  %46 = vmatpush.msra.mxu0 %v23
  %47 = vmatmul.f32.gmra.mxu0 %v29
  %v48 = vpop.f32.mrf.mxu0
  %v49 = vadd.f32 0.0, %v48
  %50 = vdwg.mxu0
  %v51 = vadd.f32 %v22, %v49
  %vm52 = vcmask 7168
  %53 = vst.msk [vmem:[#allocation2] sm:$0xff] %vm52, %v51
  // Predicated region
  $region18: #{logistic_regression_forward.1} parent=0 // pred_check
    %p54 = pneg %p15
  $region19: #{logistic_regression_forward.1} parent=0 // pred_check_branch
    %56 = sbr.rel (%p54) target = $region21
  $region20: #{logistic_regression_forward.1} parent=0 // pred_region
    %v57 = vld [vmem:[#allocation2] sm:$0xff]
    %s58 = sld [smem:[#allocation3]]
    %v59 = vstv %s58
    %v60 = vadd.f32 %v57, %v59
    %v61 = vxor.u32 %v60, 2147483648
    %v62 = vmul.f32 %v61, 1.442695
    %v63 = vpow.pop %v62
    %v64 = vadd.f32 %v63, 1.0
    %v65 = vrcp.pop %v64
    %v66 = vmul.f32 %v64, %v65
    %v67 = vsub.f32 1.0, %v66
    %v68 = vmul.f32 %v65, %v67
    %v69 = vadd.f32 %v65, %v68
    %vm70 = vweird.f32 %v64
    %vm71 = vweird.f32 %v65
    %vm72 = vmor %vm70, %vm71
    %v73 = vsel %vm72, %v65, %v69
    %v74 = vand.u32 2147483647, %v64
    %vm75 = vcmp.eq.f32.partialorder %v74, 8.507059e+37
    %v76 = vand.u32 %v64, 2147483648
    %v77 = vor.u32 1.1754944e-38, %v76
    %v78 = vsel %vm75, %v77, %v73
    %v79 = vmul.f32 1.0, %v78
    %80 = vst.msk [vmem:[%s3] sm:$0xff] %vm52, %v79
  $region21: #{logistic_regression_forward.1} parent=0 // pred_fallthru
    _
  // Predicated region
  $region22: #{logistic_regression_forward.1} parent=0 // pred_check
    _
  $region23: #{logistic_regression_forward.1} parent=0 // pred_check_branch
    %82 = sbr.rel (0) target = $region25
  $region24: #{logistic_regression_forward.1} parent=0 // pred_region
    _
  $region25: #{logistic_regression_forward.1} parent=0 // pred_fallthru
    _
  // Predicated region
  $region26: #{logistic_regression_forward.1} parent=0 // pred_check
    _
  $region27: #{logistic_regression_forward.1} parent=0 // pred_check_branch
    %84 = sbr.rel (0) target = $region29
  $region28: #{logistic_regression_forward.1} parent=0 // pred_region
    _
  $region29: #{logistic_regression_forward.1} parent=0 // pred_fallthru
    _

</llo_original>
